<compile_context>
chip_gen: v7x
topology: tpu7x:2x2x1
jax: 0.10.0
libtpu: 0.0.40
codegen_flags: <defaults>
</compile_context>

<pallas_src>
import functools

import jax
import jax.numpy as jnp
from jax.experimental import pallas as pl
from jax.experimental.pallas import tpu as pltpu


# ----------------------------------------------------------------------------
# Kernel
# ----------------------------------------------------------------------------
def _mlp_kernel(x_ref, gu_ref, dw_ref, o_ref, acc_ref, *, tile_i):
    # x_ref  : (tm, H)        bf16 activation tile (resident across I axis)
    # gu_ref : (1, H, 2*ti)   bf16 [gate | up] weight chunk, (in, out) layout
    # dw_ref : (ti, H)        bf16 down_proj weight chunk,   (in, out) layout
    # o_ref  : (tm, H)        output tile (resident across I axis)
    # acc_ref: (tm, H) f32    down-proj accumulator
    k = pl.program_id(1)

    @pl.when(k == 0)
    def _init():
        acc_ref[...] = jnp.zeros_like(acc_ref)

    x = x_ref[...]
    # One fused MXU matmul for the gate and up projections of this I chunk.
    gu = jnp.dot(x, gu_ref[0], preferred_element_type=jnp.float32)  # (tm, 2*ti)
    g = gu[:, :tile_i]
    u = gu[:, tile_i:]
    h = (g * jax.nn.sigmoid(g)) * u                                 # silu(g)*u, f32

    # Partial down projection for this I chunk, accumulated in f32.
    acc_ref[...] += jnp.dot(h.astype(dw_ref.dtype), dw_ref[...],
                            preferred_element_type=jnp.float32)

    @pl.when(k == pl.num_programs(1) - 1)
    def _finalize():
        o_ref[...] = acc_ref[...].astype(o_ref.dtype)


# ----------------------------------------------------------------------------
# One-time weight preparation (call at load time, not per forward)
# ----------------------------------------------------------------------------
def prepare_qwen25_vl_mlp_weights(gate_w, up_w, down_w, *, tile_i=512,
                                  weight_dtype=jnp.bfloat16):
    """Pack weights for the Pallas MLP kernel.

    Inputs use PyTorch nn.Linear layout:
      gate_w, up_w: (I, H)    down_w: (H, I)

    Returns:
      gu: (n_i, H, 2*ti)  bf16 per-I-chunk [gate | up] weights, (in, out) layout
      dw: (n_i*ti, H)     bf16 down_proj weights, (in, out) layout (I padded)
      ti: the chunk size actually used
    """
    I, H = gate_w.shape
    assert up_w.shape == (I, H) and down_w.shape == (H, I)

    ti = min(tile_i, I)
    n_i = pl.cdiv(I, ti)
    I_pad = n_i * ti

    def pad_i(w):  # (I, H) -> (I_pad, H); zero padding is exact (silu(0)*0 = 0)
        return jnp.pad(w, ((0, I_pad - I), (0, 0))) if I_pad != I else w

    gw = pad_i(gate_w)        # (I_pad, H)
    uw = pad_i(up_w)          # (I_pad, H)
    dw = pad_i(down_w.T)      # (I_pad, H)  == down_proj in (in, out) layout

    # (I_pad, H) -> (n_i, ti, H) -> (n_i, H, ti); pack gate|up on the lane axis.
    gw = gw.reshape(n_i, ti, H).transpose(0, 2, 1)
    uw = uw.reshape(n_i, ti, H).transpose(0, 2, 1)
    gu = jnp.concatenate([gw, uw], axis=-1)        # (n_i, H, 2*ti)

    return gu.astype(weight_dtype), dw.astype(weight_dtype), ti


# ----------------------------------------------------------------------------
# Hardware-aware sizing helpers
# ----------------------------------------------------------------------------
def _vmem_capacity_bytes():
    """Physical VMEM of the current chip; conservative fallbacks."""
    try:
        return int(pltpu.get_tpu_info().vmem_capacity_bytes)
    except Exception:
        pass
    try:
        kind = jax.devices()[0].device_kind.lower()
        if "7" in kind:                 # v7x: 64 MiB per TensorCore
            return 64 * 2**20
    except Exception:
        pass
    return 128 * 2**20                  # v5e / v6e


def _footprint_bytes(tm, H, ti, wbytes):
    """Approximate VMEM footprint for one grid step (double-buffered operands)."""
    two_ti = 2 * ti
    return (2 * tm * H * wbytes          # x tile (double-buffered)
            + 2 * H * two_ti * wbytes    # [gate|up] weight chunk
            + 2 * ti * H * wbytes        # down weight chunk
            + 2 * tm * H * wbytes        # output tile
            + tm * H * 4                 # f32 accumulator (single)
            + 2 * tm * two_ti * 4)       # f32 intermediates (gu, h)


# ----------------------------------------------------------------------------
# Forward
# ----------------------------------------------------------------------------
def qwen2_5_vl_mlp(hidden_state, gu, dw, *, tile_s=None):
    """hidden_state: (S, H); gu/dw from prepare_qwen25_vl_mlp_weights."""
    S, H = hidden_state.shape
    n_i, H2, two_ti = gu.shape
    assert H2 == H
    tile_i = two_ti // 2
    I_pad = n_i * tile_i
    assert dw.shape == (I_pad, H)

    compute_dtype = gu.dtype
    wbytes = jnp.dtype(compute_dtype).itemsize
    vmem_cap = _vmem_capacity_bytes()

    # Generation-aware S tile: big on 128 MiB VMEM parts, 512 on 64 MiB (v7x);
    # shrink if the footprint for this H / tile_i would not fit.
    if tile_s is None:
        tile_s = 1024 if vmem_cap >= 100 * 2**20 else 512
        while tile_s > 256 and _footprint_bytes(tile_s, H, tile_i, wbytes) > int(0.8 * vmem_cap):
            tile_s //= 2

    tm = min(tile_s, S)
    tm = max(8, ((tm + 7) // 8) * 8)     # sublane-aligned
    n_s = pl.cdiv(S, tm)
    S_pad = n_s * tm

    x = hidden_state.astype(compute_dtype)
    if S_pad != S:
        x = jnp.pad(x, ((0, S_pad - S), (0, 0)))

    # VMEM limit: enough for the footprint, never above physical VMEM.
    needed = _footprint_bytes(tm, H, tile_i, wbytes)
    vmem_limit = int(min(max(int(1.25 * needed), 32 * 2**20), vmem_cap - 4 * 2**20))

    in_bytes = jnp.dtype(compute_dtype).itemsize
    out_bytes = jnp.dtype(hidden_state.dtype).itemsize
    cost = pl.CostEstimate(
        flops=6 * S_pad * H * I_pad,
        transcendentals=S_pad * I_pad,
        bytes_accessed=(S_pad * H * in_bytes                  # x in
                        + S_pad * H * out_bytes               # out
                        + n_s * 3 * I_pad * H * wbytes),      # weights, re-streamed per S tile
    )

    kernel = functools.partial(_mlp_kernel, tile_i=tile_i)
    out = pl.pallas_call(
        kernel,
        out_shape=jax.ShapeDtypeStruct((S_pad, H), hidden_state.dtype),
        grid_spec=pltpu.PrefetchScalarGridSpec(
            num_scalar_prefetch=0,
            grid=(n_s, n_i),
            in_specs=[
                pl.BlockSpec((tm, H), lambda i, k: (i, 0)),            # x tile
                pl.BlockSpec((1, H, two_ti), lambda i, k: (k, 0, 0)),  # [gate|up] chunk
                pl.BlockSpec((tile_i, H), lambda i, k: (k, 0)),        # down chunk
            ],
            out_specs=pl.BlockSpec((tm, H), lambda i, k: (i, 0)),
            scratch_shapes=[pltpu.VMEM((tm, H), jnp.float32)],
        ),
        compiler_params=pltpu.CompilerParams(
            dimension_semantics=("parallel", "arbitrary"),
            vmem_limit_bytes=vmem_limit,
        ),
        cost_estimate=cost,
    )(x, gu, dw)

    if S_pad != S:
        out = out[:S]
    return out


# ----------------------------------------------------------------------------
# Reference + tests
# ----------------------------------------------------------------------------
def reference_mlp(x, gate_w, up_w, down_w):
    g = x @ gate_w.T
    u = x @ up_w.T
    return ((g * jax.nn.sigmoid(g)) * u) @ down_w.T


def _run_case(key, S, H, I, tile_i, tile_s=None):
    kx, kg, ku, kd = jax.random.split(key, 4)
    x = jax.random.normal(kx, (S, H), dtype=jnp.float32)
    gate_w = jax.random.normal(kg, (I, H), dtype=jnp.float32) * 0.05
    up_w = jax.random.normal(ku, (I, H), dtype=jnp.float32) * 0.05
    down_w = jax.random.normal(kd, (H, I), dtype=jnp.float32) * 0.05

    gu, dw, _ = prepare_qwen25_vl_mlp_weights(gate_w, up_w, down_w, tile_i=tile_i)
    out = qwen2_5_vl_mlp(x, gu, dw, tile_s=tile_s)
    out = jax.block_until_ready(out)
    assert out.shape == (S, H)

    # Reference in f32 from the same bf16-rounded operands the kernel sees.
    f32 = jnp.float32
    bf = jnp.bfloat16
    ref = reference_mlp(x.astype(bf).astype(f32),
                        gate_w.astype(bf).astype(f32),
                        up_w.astype(bf).astype(f32),
                        down_w.astype(bf).astype(f32))

    err = jnp.max(jnp.abs(out.astype(f32) - ref))
    scale = jnp.max(jnp.abs(ref)) + 1e-6
    rel = float(err / scale)
    assert rel < 2e-2, f"mismatch vs reference: relative max error {rel}"
    return out


if __name__ == "__main__":
    key = jax.random.PRNGKey(0)
    k1, k2 = jax.random.split(key)

    # Small config consistent with the module (hidden=32, intermediate=64, seq=16).
    _run_case(k1, S=16, H=32, I=64, tile_i=512)

    # Multi-tile config: forces 3 S tiles (tile_s=128) and 2 I chunks, exercising
    # S padding, the f32 accumulator across the reduction axis, and writeback.
    _run_case(k2, S=384, H=256, I=1024, tile_i=512, tile_s=128)

    print("KERNEL_OK")
</pallas_src>

<mosaic_0001>
module attributes {stable_mosaic.version = 11 : i64} {
  func.func @_mlp_kernel(%arg0: i32, %arg1: i32, %arg2: memref<16x32xbf16, #tpu.memory_space<vmem>>, %arg3: memref<1x32x128xbf16, #tpu.memory_space<vmem>>, %arg4: memref<64x32xbf16, #tpu.memory_space<vmem>>, %arg5: memref<16x32xf32, #tpu.memory_space<vmem>>, %arg6: memref<16x32xf32, #tpu.memory_space<vmem>>) attributes {dimension_semantics = [#tpu.dimension_semantics<parallel>, #tpu.dimension_semantics<arbitrary>], iteration_bounds = array<i64: 1, 1>, scalar_prefetch = 0 : i64, scratch_operands = 1 : i64, tpu.core_type = #tpu.core_type<tc>, window_params = [{transform_indices = @transform_0, window_bounds = array<i64: 16, 32>}, {transform_indices = @transform_1, window_bounds = array<i64: 1, 32, 128>}, {transform_indices = @transform_2, window_bounds = array<i64: 64, 32>}, {transform_indices = @transform_3, window_bounds = array<i64: 16, 32>}]} {
    %c0_i32 = arith.constant 0 : i32
    %0 = arith.cmpi eq, %arg1, %c0_i32 : i32
    %1 = arith.extui %0 : i1 to i32
    %c0_i32_0 = arith.constant 0 : i32
    %2 = arith.cmpi ne, %1, %c0_i32_0 : i32
    scf.if %2 {
      %cst_15 = arith.constant 0.000000e+00 : f32
      %25 = vector.broadcast %cst_15 : f32 to vector<16x32xf32>
      %c0_16 = arith.constant 0 : index
      %c0_17 = arith.constant 0 : index
      %26 = vector.load %arg6[%c0_16, %c0_17] : memref<16x32xf32, #tpu.memory_space<vmem>>, vector<16x32xf32>
      tpu.vector_store %arg6[%c0_16, %c0_17], %25 {strides = array<i32>} : memref<16x32xf32, #tpu.memory_space<vmem>>, vector<16x32xf32>,
    } else {
    }
    %c0 = arith.constant 0 : index
    %c0_1 = arith.constant 0 : index
    %3 = vector.load %arg2[%c0, %c0_1] : memref<16x32xbf16, #tpu.memory_space<vmem>>, vector<16x32xbf16>
    %c0_2 = arith.constant 0 : index
    %c0_3 = arith.constant 0 : index
    %c0_4 = arith.constant 0 : index
    %4 = vector.load %arg3[%c0_2, %c0_3, %c0_4] : memref<1x32x128xbf16, #tpu.memory_space<vmem>>, vector<1x32x128xbf16>
    %5 = vector.shape_cast %4 : vector<1x32x128xbf16> to vector<32x128xbf16>
    %cst = arith.constant dense<0.000000e+00> : vector<16x128xf32>
    %6 = tpu.matmul %3, %5, %cst {dimension_numbers = #tpu.dot_dimension_numbers<[1], [0], [0], [1], [0, 0, 1, 1], [], []>} : vector<16x32xbf16>, vector<32x128xbf16>, vector<16x128xf32> -> vector<16x128xf32>
    %7 = vector.extract_strided_slice %6 {offsets = [0, 0], sizes = [16, 64], strides = [1, 1]} : vector<16x128xf32> to vector<16x64xf32>
    %8 = vector.extract_strided_slice %6 {offsets = [0, 64], sizes = [16, 64], strides = [1, 1]} : vector<16x128xf32> to vector<16x64xf32>
    %9 = arith.negf %7 : vector<16x64xf32>
    %10 = math.exp %9 : vector<16x64xf32>
    %cst_5 = arith.constant 1.000000e+00 : f32
    %11 = vector.broadcast %cst_5 : f32 to vector<16x64xf32>
    %12 = arith.addf %11, %10 : vector<16x64xf32>
    %13 = arith.divf %11, %12 : vector<16x64xf32>
    %14 = arith.mulf %7, %13 : vector<16x64xf32>
    %15 = arith.mulf %14, %8 : vector<16x64xf32>
    %c0_6 = arith.constant 0 : index
    %c0_7 = arith.constant 0 : index
    %16 = vector.load %arg6[%c0_6, %c0_7] : memref<16x32xf32, #tpu.memory_space<vmem>>, vector<16x32xf32>
    %17 = arith.truncf %15 : vector<16x64xf32> to vector<16x64xbf16>
    %c0_8 = arith.constant 0 : index
    %c0_9 = arith.constant 0 : index
    %18 = vector.load %arg4[%c0_8, %c0_9] : memref<64x32xbf16, #tpu.memory_space<vmem>>, vector<64x32xbf16>
    %cst_10 = arith.constant dense<0.000000e+00> : vector<16x32xf32>
    %19 = tpu.matmul %17, %18, %cst_10 {dimension_numbers = #tpu.dot_dimension_numbers<[1], [0], [0], [1], [0, 0, 1, 1], [], []>} : vector<16x64xbf16>, vector<64x32xbf16>, vector<16x32xf32> -> vector<16x32xf32>
    %20 = arith.addf %16, %19 : vector<16x32xf32>
    %c0_11 = arith.constant 0 : index
    %c0_12 = arith.constant 0 : index
    %21 = vector.load %arg6[%c0_11, %c0_12] : memref<16x32xf32, #tpu.memory_space<vmem>>, vector<16x32xf32>
    tpu.vector_store %arg6[%c0_11, %c0_12], %20 {strides = array<i32>} : memref<16x32xf32, #tpu.memory_space<vmem>>, vector<16x32xf32>,
    %c0_i32_13 = arith.constant 0 : i32
    %22 = arith.cmpi eq, %arg1, %c0_i32_13 : i32
    %23 = arith.extui %22 : i1 to i32
    %c0_i32_14 = arith.constant 0 : i32
    %24 = arith.cmpi ne, %23, %c0_i32_14 : i32
    scf.if %24 {
      %c0_15 = arith.constant 0 : index
      %c0_16 = arith.constant 0 : index
      %25 = vector.load %arg6[%c0_15, %c0_16] : memref<16x32xf32, #tpu.memory_space<vmem>>, vector<16x32xf32>
      %c0_17 = arith.constant 0 : index
      %c0_18 = arith.constant 0 : index
      %26 = vector.load %arg5[%c0_17, %c0_18] : memref<16x32xf32, #tpu.memory_space<vmem>>, vector<16x32xf32>
      tpu.vector_store %arg5[%c0_17, %c0_18], %25 {strides = array<i32>} : memref<16x32xf32, #tpu.memory_space<vmem>>, vector<16x32xf32>,
    } else {
    }
    return
  }
  func.func @transform_0(%arg0: i32, %arg1: i32) -> (i32, i32) {
    %c0_i32 = arith.constant 0 : i32
    %c0_i32_0 = arith.constant 0 : i32
    return %arg0, %c0_i32 : i32, i32
  }
  func.func @transform_1(%arg0: i32, %arg1: i32) -> (i32, i32, i32) {
    %c0_i32 = arith.constant 0 : i32
    %c0_i32_0 = arith.constant 0 : i32
    %c0_i32_1 = arith.constant 0 : i32
    return %arg1, %c0_i32, %c0_i32_0 : i32, i32, i32
  }
  func.func @transform_2(%arg0: i32, %arg1: i32) -> (i32, i32) {
    %c0_i32 = arith.constant 0 : i32
    %c0_i32_0 = arith.constant 0 : i32
    return %arg1, %c0_i32 : i32, i32
  }
  func.func @transform_3(%arg0: i32, %arg1: i32) -> (i32, i32) {
    %c0_i32 = arith.constant 0 : i32
    %c0_i32_0 = arith.constant 0 : i32
    return %arg0, %c0_i32 : i32, i32
  }
}

</mosaic_0001>

<llo_original>
// kernel: tpu_custom_call.1
$region0: #{tpu_custom_call.1}
  #allocation0 [shape = 'u32[]', space=smem, size = 0x4, offset = 0x4, fixed_abs, tag = 'smem constant byte address 0x4 - core index']
  #allocation1 [shape = 'u32[144,128]{1,0:T(1,128)}', space=vmem, size = 0x12000, scoped, tag = 'internal scratch']
  #allocation2 [shape = 'f32[16,32]{1,0:T(8,128)}', space=vmem, size = 0x2000, scoped, tag = 'scratch operand']
  %s0 = inlined_call_operand.vmem [shape: bf16[16,32], index: 0, kind: input, shape index: {}]
  %s1 = inlined_call_operand.vmem [shape: bf16[1,32,128], index: 1, kind: input, shape index: {}]
  %s2 = inlined_call_operand.vmem [shape: bf16[64,32], index: 2, kind: input, shape index: {}]
  %s3 = inlined_call_operand.hbm [shape: f32[16,32], index: 3, kind: output, shape index: {}]
  %s4 = sld [smem:[#allocation0]]
  $region30: #{tpu_custom_call.1} parent=0
    _
  %s6 = ssub.s32 1, %s4
  %s7 = scalar_select 0, %s6, %s4
  $region1: #{tpu_custom_call.1} parent=0
    #allocation3 [shape = 'u8[8192]{0}', space=vmem, size = 0x2000, scoped, tag = 'output window, operand 0, single buffered']
    #allocation4 [shape = 's32[1]{0}', space=sflag, size = 0x4, scoped, tag = 'scoped memory for tpu_custom_call.1']
    %8 = vsyncpa [#allocation4], 0
    // Predicated region
    $region2: #{tpu_custom_call.1} parent=1 // pred_check
      _
    $region3: #{tpu_custom_call.1} parent=1 // pred_check_branch
      %10 = sbr.rel (0) target = $region5
    $region4: #{tpu_custom_call.1} parent=1 // pred_region
      _
    $region5: #{tpu_custom_call.1} parent=1 // pred_fallthru
      _
    // Predicated region
    $region6: #{tpu_custom_call.1} parent=1 // pred_check
      _
    $region7: #{tpu_custom_call.1} parent=1 // pred_check_branch
      %12 = sbr.rel (0) target = $region9
    $region8: #{tpu_custom_call.1} parent=1 // pred_region
      _
    $region9: #{tpu_custom_call.1} parent=1 // pred_fallthru
      _
    // Predicated region
    $region10: #{tpu_custom_call.1} parent=1 // pred_check
      _
    $region11: #{tpu_custom_call.1} parent=1 // pred_check_branch
      %14 = sbr.rel (0) target = $region13
    $region12: #{tpu_custom_call.1} parent=1 // pred_region
      _
    $region13: #{tpu_custom_call.1} parent=1 // pred_fallthru
      _
    %p16 = scmp.eq.s32.totalorder 0, 0
    // Predicated region
    $region14: #{tpu_custom_call.1} parent=1 // pred_check
      %p17 = pneg %p16
    $region15: #{tpu_custom_call.1} parent=1 // pred_check_branch
      %19 = sbr.rel (%p17) target = $region17
    $region16: #{tpu_custom_call.1} parent=1 // pred_region
      %vm20 = vcmask 261120
      %21 = vst.msk [vmem:[#allocation2] sm:$0xff] %vm20, 0.0
      %22 = vst.msk [vmem:[#allocation2 + $0x8] sm:$0xff] %vm20, 0.0
    $region17: #{tpu_custom_call.1} parent=1 // pred_fallthru
      _
    %v23 = vld [vmem:[%s0] sm:$0xf]
    %v24 = vld [vmem:[%s0 + $0x4] sm:$0xf]
    %v25 = vld [vmem:[%s1] sm:$0xf]
    %v26 = vld [vmem:[%s1 + $0x4] sm:$0xf]
    %v27 = vld [vmem:[%s1 + $0x8] sm:$0xf]
    %v28 = vld [vmem:[%s1 + $0xc] sm:$0xf]
    %v31 = vunpack.c.l.b16 %v23
    %v32 = vunpack.c.l.b16 %v24
    %v33 = vpack.c.b16 %v32, %v31
    %v38 = vunpack.c.l.b16 %v25
    %v39 = vunpack.c.l.b16 %v26
    %v40 = vunpack.c.l.b16 %v27
    %v41 = vunpack.c.l.b16 %v28
    %v42 = vpack.c.b16 %v39, %v38
    %v43 = vpack.c.b16 %v41, %v40
    %vm46 = vcmask 261120
    %v48 = vsel %vm46, %v33, 0
    %50 = vmatprep.subr.bf16.mxu0 0
    %51 = vmatpush1.bf16.msra.mxu0 %v42
    %52 = vmatprep.subr.bf16.mxu0 0
    %53 = vmatpush1.bf16.msra.mxu0 %v43
    %54 = vmatprep.subr.bf16.mxu0 0
    %55 = vmatpush1.bf16.msra.mxu0 0
    %56 = vmatprep.subr.bf16.mxu0 0
    %57 = vmatpush1.bf16.msra.mxu0 0
    %58 = vmatprep.subr.bf16.mxu0 0
    %59 = vmatpush1.bf16.msra.mxu0 0
    %60 = vmatprep.subr.bf16.mxu0 0
    %61 = vmatpush1.bf16.msra.mxu0 0
    %62 = vmatprep.subr.bf16.mxu0 0
    %63 = vmatpush1.bf16.msra.mxu0 0
    %64 = vmatprep.subr.bf16.mxu0 0
    %65 = vmatpush1.bf16.msra.mxu0 0
    %66 = vmatprep.subr.bf16.mxu0 0
    %67 = vmatpush1.bf16.msra.mxu0 0
    %68 = vmatprep.subr.bf16.mxu0 0
    %69 = vmatpush1.bf16.msra.mxu0 0
    %70 = vmatprep.subr.bf16.mxu0 0
    %71 = vmatpush1.bf16.msra.mxu0 0
    %72 = vmatprep.subr.bf16.mxu0 0
    %73 = vmatpush1.bf16.msra.mxu0 0
    %74 = vmatprep.subr.bf16.mxu0 0
    %75 = vmatpush1.bf16.msra.mxu0 0
    %76 = vmatprep.subr.bf16.mxu0 0
    %77 = vmatpush1.bf16.msra.mxu0 0
    %78 = vmatprep.subr.bf16.mxu0 0
    %79 = vmatpush1.bf16.msra.mxu0 0
    %80 = vmatprep.subr.bf16.mxu0 0
    %81 = vmatpush1.bf16.msra.mxu0 0
    %82 = vmatprep.mubr.bf16.mxu0 0
    %83 = vmatmul.mubr.bf16.gmra.mrb[0].mxu0 %v48
    %v84 = vpop.f32.mrb[0].mxu0
    %v85 = vadd.f32 0.0, %v84
    %v86 = vpop.f32.mrb[0].mxu0
    %v87 = vpop.f32.mrb[0].mxu0
    %v88 = vadd.f32 0.0, %v87
    %v89 = vpop.f32.mrb[0].mxu0
    %90 = vdwg.mxu0
    %v91 = vxor.u32 %v85, 2147483648
    %v92 = vxor.u32 %v88, 2147483648
    %v93 = vmul.f32 %v91, 1.442695
    %v94 = vpow.pop %v93
    %v95 = vmul.f32 %v92, 1.442695
    %v96 = vpow.pop %v95
    %v97 = vadd.f32 %v94, 1.0
    %v98 = vadd.f32 %v96, 1.0
    %v99 = vrcp.pop %v97
    %v100 = vmul.f32 1.0, %v99
    %v101 = vrcp.pop %v98
    %v102 = vmul.f32 1.0, %v101
    %v103 = vmul.f32 %v85, %v100
    %v104 = vmul.f32 %v88, %v102
    %107 = vrot.lane.b32.xlu0 %v85, 64
    %v108 = vpop.permute.xlu0 %107
    %109 = vrot.lane.b32.xlu0 %v88, 64
    %v110 = vpop.permute.xlu0 %109
    %v113 = vmul.f32 %v103, %v108
    %v114 = vmul.f32 %v104, %v110
    %v115 = vld [vmem:[#allocation2] sm:$0xff]
    %v116 = vld [vmem:[#allocation2 + $0x8] sm:$0xff]
    %v117 = vpack.c.bf16 %v114, %v113
    %v118 = vld [vmem:[%s2] sm:$0xf]
    %v119 = vld [vmem:[%s2 + $0x4] sm:$0xf]
    %v120 = vld [vmem:[%s2 + $0x8] sm:$0xf]
    %v121 = vld [vmem:[%s2 + $0xc] sm:$0xf]
    %v122 = vld [vmem:[%s2 + $0x10] sm:$0xf]
    %v123 = vld [vmem:[%s2 + $0x14] sm:$0xf]
    %v124 = vld [vmem:[%s2 + $0x18] sm:$0xf]
    %v125 = vld [vmem:[%s2 + $0x1c] sm:$0xf]
    %v134 = vunpack.c.l.b16 %v118
    %v135 = vunpack.c.l.b16 %v119
    %v136 = vunpack.c.l.b16 %v120
    %v137 = vunpack.c.l.b16 %v121
    %v138 = vunpack.c.l.b16 %v122
    %v139 = vunpack.c.l.b16 %v123
    %v140 = vunpack.c.l.b16 %v124
    %v141 = vunpack.c.l.b16 %v125
    %v142 = vpack.c.b16 %v135, %v134
    %v143 = vpack.c.b16 %v137, %v136
    %v144 = vpack.c.b16 %v139, %v138
    %v145 = vpack.c.b16 %v141, %v140
    %vm150 = vcmask 523264
    %v152 = vsel %vm150, %v117, 0
    %154 = vmatprep.subr.bf16.mxu0 0
    %155 = vmatpush1.bf16.msra.mxu0 %v142
    %156 = vmatprep.subr.bf16.mxu0 0
    %157 = vmatpush1.bf16.msra.mxu0 %v143
    %158 = vmatprep.subr.bf16.mxu0 0
    %159 = vmatpush1.bf16.msra.mxu0 %v144
    %160 = vmatprep.subr.bf16.mxu0 0
    %161 = vmatpush1.bf16.msra.mxu0 %v145
    %162 = vmatprep.subr.bf16.mxu0 0
    %163 = vmatpush1.bf16.msra.mxu0 0
    %164 = vmatprep.subr.bf16.mxu0 0
    %165 = vmatpush1.bf16.msra.mxu0 0
    %166 = vmatprep.subr.bf16.mxu0 0
    %167 = vmatpush1.bf16.msra.mxu0 0
    %168 = vmatprep.subr.bf16.mxu0 0
    %169 = vmatpush1.bf16.msra.mxu0 0
    %170 = vmatprep.subr.bf16.mxu0 0
    %171 = vmatpush1.bf16.msra.mxu0 0
    %172 = vmatprep.subr.bf16.mxu0 0
    %173 = vmatpush1.bf16.msra.mxu0 0
    %174 = vmatprep.subr.bf16.mxu0 0
    %175 = vmatpush1.bf16.msra.mxu0 0
    %176 = vmatprep.subr.bf16.mxu0 0
    %177 = vmatpush1.bf16.msra.mxu0 0
    %178 = vmatprep.subr.bf16.mxu0 0
    %179 = vmatpush1.bf16.msra.mxu0 0
    %180 = vmatprep.subr.bf16.mxu0 0
    %181 = vmatpush1.bf16.msra.mxu0 0
    %182 = vmatprep.subr.bf16.mxu0 0
    %183 = vmatpush1.bf16.msra.mxu0 0
    %184 = vmatprep.subr.bf16.mxu0 0
    %185 = vmatpush1.bf16.msra.mxu0 0
    %186 = vmatprep.mubr.bf16.mxu0 0
    %187 = vmatmul.mubr.bf16.gmra.mrb[0].mxu0 %v152
    %v188 = vpop.f32.mrb[0].mxu0
    %v189 = vadd.f32 0.0, %v188
    %v190 = vpop.f32.mrb[0].mxu0
    %v191 = vpop.f32.mrb[0].mxu0
    %v192 = vadd.f32 0.0, %v191
    %v193 = vpop.f32.mrb[0].mxu0
    %194 = vdwg.mxu0
    %v195 = vadd.f32 %v115, %v189
    %v196 = vadd.f32 %v116, %v192
    %197 = vst.msk [vmem:[#allocation2] sm:$0xff] %vm46, %v195
    %198 = vst.msk [vmem:[#allocation2 + $0x8] sm:$0xff] %vm46, %v196
    // Predicated region
    $region18: #{tpu_custom_call.1} parent=1 // pred_check
      %p199 = pneg %p16
    $region19: #{tpu_custom_call.1} parent=1 // pred_check_branch
      %201 = sbr.rel (%p199) target = $region21
    $region20: #{tpu_custom_call.1} parent=1 // pred_region
      %v202 = vld [vmem:[#allocation2] sm:$0xff]
      %v203 = vld [vmem:[#allocation2 + $0x8] sm:$0xff]
      %204 = vst.msk [vmem:[#allocation3] sm:$0xff] %vm46, %v202
      %205 = vst.msk [vmem:[#allocation3 + $0x8] sm:$0xff] %vm46, %v203
    $region21: #{tpu_custom_call.1} parent=1 // pred_fallthru
      _
    // Predicated region
    $region22: #{tpu_custom_call.1} parent=1 // pred_check
      _
    $region23: #{tpu_custom_call.1} parent=1 // pred_check_branch
      %207 = sbr.rel (0) target = $region25
    $region24: #{tpu_custom_call.1} parent=1 // pred_region
      %s209 = ssub.s32 256, 256
      %210 = vsyncadd [#allocation4], %s209
      %s211 = sshll.u32 [#allocation3], 4
      %s212 = int_to_ptr.vmem [resolvable:$true] %s211
      %217 = dma.vmem_to_hbm [thread:$0]  %s212, 256, %s3, [#allocation4], 128, 128, 8
    $region25: #{tpu_custom_call.1} parent=1 // pred_fallthru
      _
    // Predicated region
    $region26: #{tpu_custom_call.1} parent=1 // pred_check
      _
    $region27: #{tpu_custom_call.1} parent=1 // pred_check_branch
      %219 = sbr.rel (0) target = $region29
    $region28: #{tpu_custom_call.1} parent=1 // pred_region
      %220 = dma.done [#allocation4], 256
    $region29: #{tpu_custom_call.1} parent=1 // pred_fallthru
      _
    %221 = vsyncpa [#allocation4], 1

</llo_original>
